<compile_context>
chip_gen: v7x
topology: tpu7x:2x2x1
jax: 0.10.0
libtpu: 0.0.40
codegen_flags: <defaults>
</compile_context>

<pallas_src>
import jax
import jax.numpy as jnp
from jax.experimental import pallas as pl
from jax.experimental.pallas import tpu as pltpu


# ----------------------------------------------------------------------------
# Primary path: zero-copy aliased no-op kernel (0 bytes moved).
# ----------------------------------------------------------------------------
def _noop_identity_kernel(x_ref, o_ref):
    # Output buffer is the input buffer (aliased); nothing needs to move.
    # touch() pins the read/write dependency so the aliased output
    # materializes without any data movement.
    del x_ref
    pltpu.touch(o_ref)


def _identity_zero_copy(x):
    return pl.pallas_call(
        _noop_identity_kernel,
        out_shape=jax.ShapeDtypeStruct(x.shape, x.dtype),
        in_specs=[pl.BlockSpec(memory_space=pl.ANY)],   # raw HBM ref, no DMA
        out_specs=pl.BlockSpec(memory_space=pl.ANY),    # raw HBM ref, no DMA
        input_output_aliases={0: 0},                    # output == input buffer
    )(x)


# ----------------------------------------------------------------------------
# Fallback path: lane-dense, VMEM-pipelined, aliased streaming copy.
# (Only used if the zero-copy form fails to lower on a given toolchain.)
# ----------------------------------------------------------------------------
def _copy_kernel(x_ref, o_ref):
    o_ref[...] = x_ref[...]


def _sublane_multiple(dtype):
    """Native sublane packing granularity: 8 for 32-bit, 16 for bf16, 32 for 8-bit."""
    bits = jnp.dtype(dtype).itemsize * 8
    if bits >= 32:
        return 8
    if bits == 16:
        return 16
    return 32


def _vmem_capacity_bytes():
    try:
        return int(pltpu.get_tpu_info().vmem_capacity_bytes)
    except Exception:
        return 64 * 1024 * 1024  # conservative (v7x-sized) default


def _choose_lane_dim(n):
    """Largest multiple of 128 that divides n, capped at 2048 (lane-dense)."""
    for lanes in range(2048, 0, -128):
        if n % lanes == 0:
            return lanes
    return None


def _identity_tiled_copy(x):
    orig_shape = x.shape
    dtype = x.dtype
    n = x.size
    itemsize = jnp.dtype(dtype).itemsize
    sub = _sublane_multiple(dtype)

    # Tile budget gated on VMEM capacity: ~8 MiB tiles on 128-MiB parts
    # (v5e/v6e), ~4 MiB on 64-MiB parts (v7x). 2 in-bufs + 2 out-bufs of that
    # size stay well under the scoped limit on every generation.
    vmem_cap = _vmem_capacity_bytes()
    big_vmem = vmem_cap >= 96 * 1024 * 1024
    tile_budget = (8 if big_vmem else 4) * 1024 * 1024
    vmem_limit = min(vmem_cap // 2, 6 * tile_budget)

    lanes = _choose_lane_dim(n)
    if lanes is None:
        # Total size not a multiple of 128: use the full last dim as the lane
        # axis (full-dim block is always legal) but still grid over rows so
        # VMEM stays bounded and the copy stays double-buffered.
        cols = orig_shape[-1] if x.ndim >= 1 else 1
    else:
        cols = lanes
    rows = n // cols

    max_tile_rows = max(sub, (tile_budget // (cols * itemsize)) // sub * sub)
    tile_rows = rows if rows <= max_tile_rows else max_tile_rows
    grid = (pl.cdiv(rows, tile_rows),)

    cost = pl.CostEstimate(flops=0, transcendentals=0,
                           bytes_accessed=2 * n * itemsize)

    x2d = x.reshape(rows, cols)
    out2d = pl.pallas_call(
        _copy_kernel,
        out_shape=jax.ShapeDtypeStruct((rows, cols), dtype),
        grid=grid,
        in_specs=[pl.BlockSpec((tile_rows, cols), lambda i: (i, 0))],
        out_specs=pl.BlockSpec((tile_rows, cols), lambda i: (i, 0)),
        input_output_aliases={0: 0},
        cost_estimate=cost,
        compiler_params=pltpu.CompilerParams(
            dimension_semantics=("parallel",),
            vmem_limit_bytes=int(vmem_limit),
        ),
    )(x2d)
    return out2d.reshape(orig_shape)


# ----------------------------------------------------------------------------
# Public wrapper: CustomHeadBase.forward (identity).
# ----------------------------------------------------------------------------
def custom_head_base_forward(x):
    """Pallas implementation of CustomHeadBase.forward (empty nn.Sequential)."""
    # Degenerate shapes: identity needs no kernel at all.
    if x.ndim == 0 or x.size == 0:
        return x
    try:
        out = _identity_zero_copy(x)
        jax.block_until_ready(out)
        return out
    except Exception:
        # Robustness fallback: lane-dense aliased streaming copy.
        return _identity_tiled_copy(x)


if __name__ == "__main__":
    key = jax.random.PRNGKey(0)
    # Small NCHW input consistent with a conv-style feature map feeding a head.
    x = jax.random.normal(key, (2, 4, 16, 16), dtype=jnp.float32)

    y = custom_head_base_forward(x)
    jax.block_until_ready(y)

    # Verify identity semantics (empty Sequential applies zero modules).
    assert y.shape == x.shape
    assert y.dtype == x.dtype
    assert bool(jnp.allclose(y, x)), "identity forward mismatch"

    print("KERNEL_OK")
</pallas_src>

<mosaic_0001>
module attributes {stable_mosaic.version = 11 : i64} {
  func.func @_noop_identity_kernel(%arg0: memref<2x4x16x16xf32, #tpu.memory_space<any>>, %arg1: memref<2x4x16x16xf32, #tpu.memory_space<any>>) attributes {dimension_semantics = [], scalar_prefetch = 0 : i64, scratch_operands = 0 : i64, tpu.core_type = #tpu.core_type<tc>} {
    return
  }
}

module attributes {stable_mosaic.version = 11 : i64} {
  func.func @_copy_kernel(%arg0: i32, %arg1: memref<1x2048xf32, #tpu.memory_space<vmem>>, %arg2: memref<1x2048xf32, #tpu.memory_space<vmem>>) attributes {dimension_semantics = [#tpu.dimension_semantics<parallel>], iteration_bounds = array<i64: 1>, scalar_prefetch = 0 : i64, scratch_operands = 0 : i64, tpu.core_type = #tpu.core_type<tc>, window_params = [{transform_indices = @transform_0, window_bounds = array<i64: 1, 2048>}, {transform_indices = @transform_1, window_bounds = array<i64: 1, 2048>}]} {
    %c0 = arith.constant 0 : index
    %c0_0 = arith.constant 0 : index
    %0 = vector.load %arg1[%c0, %c0_0] : memref<1x2048xf32, #tpu.memory_space<vmem>>, vector<1x2048xf32>
    %c0_1 = arith.constant 0 : index
    %c0_2 = arith.constant 0 : index
    %1 = vector.load %arg2[%c0_1, %c0_2] : memref<1x2048xf32, #tpu.memory_space<vmem>>, vector<1x2048xf32>
    tpu.vector_store %arg2[%c0_1, %c0_2], %0 {strides = array<i32>} : memref<1x2048xf32, #tpu.memory_space<vmem>>, vector<1x2048xf32>,
    return
  }
  func.func @transform_0(%arg0: i32) -> (i32, i32) {
    %c0_i32 = arith.constant 0 : i32
    %c0_i32_0 = arith.constant 0 : i32
    return %arg0, %c0_i32 : i32, i32
  }
  func.func @transform_1(%arg0: i32) -> (i32, i32) {
    %c0_i32 = arith.constant 0 : i32
    %c0_i32_0 = arith.constant 0 : i32
    return %arg0, %c0_i32 : i32, i32
  }
}

</mosaic_0001>

<llo_original>
// kernel: tpu_custom_call.1
$region0: #{tpu_custom_call.1}
  #allocation0 [shape = 'u32[]', space=smem, size = 0x4, offset = 0x4, fixed_abs, tag = 'smem constant byte address 0x4 - core index']
  #allocation1 [shape = 'u32[144,128]{1,0:T(1,128)}', space=vmem, size = 0x12000, scoped, tag = 'internal scratch']
  %s0 = inlined_call_operand.hbm [shape: f32[2,4,16,16], index: 0, kind: input, shape index: {}, may-alias: {0,1}]
  %s1 = inlined_call_operand.hbm [shape: f32[2,4,16,16], index: 1, kind: output, shape index: {}, may-alias: {0,1}]
  %s2 = sld [smem:[#allocation0]]
  $region2: #{tpu_custom_call.1} parent=0
    _
  %s4 = ssub.s32 1, %s2
  %s5 = scalar_select 0, %s4, %s2

// kernel: tpu_custom_call.1
$region0: #{tpu_custom_call.1}
  #allocation0 [shape = 'u32[]', space=smem, size = 0x4, offset = 0x4, fixed_abs, tag = 'smem constant byte address 0x4 - core index']
  #allocation1 [shape = 'u32[144,128]{1,0:T(1,128)}', space=vmem, size = 0x12000, scoped, tag = 'internal scratch']
  %s0 = inlined_call_operand.hbm [shape: f32[1,2048], index: 0, kind: input, shape index: {}, may-alias: {0,1}]
  %s1 = inlined_call_operand.hbm [shape: f32[1,2048], index: 1, kind: output, shape index: {}, may-alias: {0,1}]
  %s2 = sld [smem:[#allocation0]]
  $region18: #{tpu_custom_call.1} parent=0
    _
  %s4 = ssub.s32 1, %s2
  %s5 = scalar_select 0, %s4, %s2
  $region1: #{tpu_custom_call.1} parent=0
    #allocation2 [shape = 'u8[8192]{0}', space=vmem, size = 0x2000, scoped, tag = 'input window, operand 0, single buffered']
    #allocation3 [shape = 's32[1]{0}', space=sflag, size = 0x4, scoped, tag = 'scoped memory for tpu_custom_call.1']
    #allocation4 [shape = 's32[1]{0}', space=sflag, size = 0x4, scoped, tag = 'scoped memory for tpu_custom_call.1']
    #allocation5 [shape = 'u8[8192]{0}', space=vmem, size = 0x2000, scoped, tag = 'output window, operand 0, single buffered']
    %6 = vsyncpa [#allocation3], 0
    %7 = vsyncpa [#allocation4], 0
    // Predicated region
    $region2: #{tpu_custom_call.1} parent=1 // pred_check
      _
    $region3: #{tpu_custom_call.1} parent=1 // pred_check_branch
      %9 = sbr.rel (0) target = $region5
    $region4: #{tpu_custom_call.1} parent=1 // pred_region
      %s11 = ssub.s32 256, 256
      %12 = vsyncadd [#allocation3], %s11
      %s14 = sshll.u32 [#allocation2], 4
      %s15 = int_to_ptr.vmem [resolvable:$true] %s14
      %17 = dma.hbm_to_vmem [thread:$0]  %s0, 256, %s15, [#allocation3]
    $region5: #{tpu_custom_call.1} parent=1 // pred_fallthru
      _
    // Predicated region
    $region6: #{tpu_custom_call.1} parent=1 // pred_check
      _
    $region7: #{tpu_custom_call.1} parent=1 // pred_check_branch
      %19 = sbr.rel (0) target = $region9
    $region8: #{tpu_custom_call.1} parent=1 // pred_region
      %20 = dma.done [#allocation3], 256
    $region9: #{tpu_custom_call.1} parent=1 // pred_fallthru
      _
    %v21 = vld [vmem:[#allocation2] sm:$0xff]
    %v22 = vld [vmem:[#allocation2 + $0x8] sm:$0xff]
    %23 = vst [vmem:[#allocation5] sm:$0xff] %v21
    %24 = vst [vmem:[#allocation5 + $0x8] sm:$0xff] %v22
    // Predicated region
    $region10: #{tpu_custom_call.1} parent=1 // pred_check
      _
    $region11: #{tpu_custom_call.1} parent=1 // pred_check_branch
      %26 = sbr.rel (0) target = $region13
    $region12: #{tpu_custom_call.1} parent=1 // pred_region
      %s28 = ssub.s32 256, 256
      %29 = vsyncadd [#allocation4], %s28
      %s31 = sshll.u32 [#allocation5], 4
      %s32 = int_to_ptr.vmem [resolvable:$true] %s31
      %34 = dma.vmem_to_hbm [thread:$0]  %s32, 256, %s1, [#allocation4]
    $region13: #{tpu_custom_call.1} parent=1 // pred_fallthru
      _
    // Predicated region
    $region14: #{tpu_custom_call.1} parent=1 // pred_check
      _
    $region15: #{tpu_custom_call.1} parent=1 // pred_check_branch
      %36 = sbr.rel (0) target = $region17
    $region16: #{tpu_custom_call.1} parent=1 // pred_region
      %37 = dma.done [#allocation4], 256
    $region17: #{tpu_custom_call.1} parent=1 // pred_fallthru
      _
    %38 = vsyncpa [#allocation3], 1
    %39 = vsyncpa [#allocation4], 1

</llo_original>
